<compile_context>
chip_gen: v7x
topology: tpu7x:2x2x1
jax: 0.10.0
libtpu: 0.0.40
codegen_flags: <defaults>
</compile_context>

<pallas_src>
import math

import jax
import jax.numpy as jnp
from jax.experimental import pallas as pl
from jax.experimental.pallas import tpu as pltpu


# ---------------------------------------------------------------------------
# Kernels
# ---------------------------------------------------------------------------
def _packed_kernel(lm_ref, act_ref,
                   w1l_ref, w1a_ref, b1_ref,
                   w2_ref, b2_ref,
                   w3_ref, b3_ref,
                   o_ref):
    """Small-D path: all 4 heads fused into one 3-matmul chain.

    w1a has zero columns for the v-heads; w2/w3 are block-diagonal over heads.
    Weights/activations bf16, accumulation f32.
    """
    wt = w1l_ref.dtype
    h1 = jnp.dot(lm_ref[...], w1l_ref[...], preferred_element_type=jnp.float32)
    h1 = h1 + jnp.dot(act_ref[...], w1a_ref[...],
                      preferred_element_type=jnp.float32)
    h1 = jnp.maximum(h1 + b1_ref[...], 0.0)

    h2 = jnp.dot(h1.astype(wt), w2_ref[...],
                 preferred_element_type=jnp.float32) + b2_ref[...]
    h2 = jnp.maximum(h2, 0.0)

    out = jnp.dot(h2.astype(wt), w3_ref[...],
                  preferred_element_type=jnp.float32) + b3_ref[...]
    o_ref[...] = out.astype(o_ref.dtype)


def _per_head_kernel(lm_ref, act_ref,
                     w1l_ref, w1a_ref, b1_ref,
                     w2_ref, b2_ref,
                     w3_ref, b3_ref,
                     o_ref):
    """Large-D path: wide layer-1 matmul, layers 2/3 contracted per head.

    w1a is trimmed to the q-head columns [D, 2D]; w2 is [4, D, D],
    w3 is [4, D, out_pad] (no block-diagonal zero padding).
    """
    wt = w1l_ref.dtype
    D = w1a_ref.shape[0]
    n_heads = w2_ref.shape[0]

    # Layer 1: lm feeds all 4 heads, action only the 2 q-heads.
    h1 = jnp.dot(lm_ref[...], w1l_ref[...],
                 preferred_element_type=jnp.float32) + b1_ref[...]   # [B, 4D]
    h1_act = jnp.dot(act_ref[...], w1a_ref[...],
                     preferred_element_type=jnp.float32)             # [B, 2D]

    outs = []
    for h in range(n_heads):
        hh = h1[:, h * D:(h + 1) * D]
        if h < 2:                         # q-heads get the action contribution
            hh = hh + h1_act[:, h * D:(h + 1) * D]
        hh = jnp.maximum(hh, 0.0).astype(wt)
        h2 = jnp.dot(hh, w2_ref[h], preferred_element_type=jnp.float32)
        h2 = jnp.maximum(h2 + b2_ref[h], 0.0).astype(wt)
        outs.append(jnp.dot(h2, w3_ref[h],
                            preferred_element_type=jnp.float32) + b3_ref[h])
    o_ref[...] = jnp.concatenate(outs, axis=1).astype(o_ref.dtype)


# ---------------------------------------------------------------------------
# Parameter init (mirrors nn.Linear) and packing into the fused layouts.
# ---------------------------------------------------------------------------
def init_linear(key, fan_in, fan_out):
    k_w, k_b = jax.random.split(key)
    bound = 1.0 / math.sqrt(fan_in)
    # Stored as [in, out] (transpose of PyTorch) so y = x @ W + b.
    w = jax.random.uniform(k_w, (fan_in, fan_out), jnp.float32, -bound, bound)
    b = jax.random.uniform(k_b, (1, fan_out), jnp.float32, -bound, bound)
    return w, b


def init_mlp(key, in_dim, hidden, out_dim):
    k1, k2, k3 = jax.random.split(key, 3)
    return (*init_linear(k1, in_dim, hidden),
            *init_linear(k2, hidden, hidden),
            *init_linear(k3, hidden, out_dim))


def pack_double_critic_params(critic1_p, critic2_p, v_critic1_p, v_critic2_p,
                              *, weight_dtype=jnp.bfloat16):
    """Pack the 4 heads [critic1 | critic2 | v_critic1 | v_critic2]."""
    heads = (critic1_p, critic2_p, v_critic1_p, v_critic2_p)
    D = v_critic1_p[0].shape[0]
    out_dim = critic1_p[4].shape[1]
    # Per-head output columns padded so the packed slab width (4*out_pad)
    # is a multiple of 128 lanes => unmasked, lane-dense output stores.
    out_pad = -(-out_dim // 32) * 32
    per_head = D > 128
    wdt = weight_dtype

    # Layer 1: lm columns of all heads side by side.
    w1l = jnp.concatenate(
        [critic1_p[0][:D], critic2_p[0][:D], v_critic1_p[0], v_critic2_p[0]],
        axis=1).astype(wdt)                                          # [D, 4D]
    b1 = jnp.concatenate([h[1] for h in heads], axis=1)              # [1, 4D]

    def pad3(w, b):
        w = jnp.pad(w, ((0, 0), (0, out_pad - out_dim)))
        b = jnp.pad(b, ((0, 0), (0, out_pad - out_dim)))
        return w, b

    w3b, b3b = zip(*(pad3(h[4], h[5]) for h in heads))

    if per_head:
        # Trimmed action weights (q-heads only) + stacked per-head W2/W3.
        w1a = jnp.concatenate([critic1_p[0][D:], critic2_p[0][D:]],
                              axis=1).astype(wdt)                    # [D, 2D]
        w2 = jnp.stack([h[2] for h in heads]).astype(wdt)            # [4,D,D]
        b2 = jnp.stack([h[3] for h in heads])                        # [4,1,D]
        w3 = jnp.stack(w3b).astype(wdt)                              # [4,D,Op]
        b3 = jnp.stack(b3b)                                          # [4,1,Op]
    else:
        # Block-diagonal packing; zero padding is free at these tiny widths.
        zero = jnp.zeros((D, D), jnp.float32)
        w1a = jnp.concatenate([critic1_p[0][D:], critic2_p[0][D:], zero, zero],
                              axis=1).astype(wdt)                    # [D, 4D]
        w2 = jax.scipy.linalg.block_diag(*[h[2] for h in heads]).astype(wdt)
        b2 = jnp.concatenate([h[3] for h in heads], axis=1)          # [1, 4D]
        w3 = jax.scipy.linalg.block_diag(*w3b).astype(wdt)           # [4D,4Op]
        b3 = jnp.concatenate(b3b, axis=1)                            # [1,4Op]

    return dict(mode="per_head" if per_head else "packed",
                in_dim=D, out_dim=out_dim, out_pad=out_pad,
                params=(w1l, w1a, b1, w2, b2, w3, b3))


# ---------------------------------------------------------------------------
# Forward: one pallas_call for all four heads.
# ---------------------------------------------------------------------------
def _round_up(x, m):
    return -(-x // m) * m


def double_critic_forward(lm_states, action_states, packed, *,
                          batch_tile=512, vmem_budget_bytes=40 << 20):
    """Pallas implementation of DoubleCritic.forward (post-encoder part).

    Returns (critic1(q), critic2(q), v_critic1(lm), v_critic2(lm)).
    """
    mode = packed["mode"]
    D = packed["in_dim"]
    out_dim = packed["out_dim"]
    out_pad = packed["out_pad"]
    params = packed["params"]
    w1l = params[0]
    wdt = w1l.dtype
    kernel = _per_head_kernel if mode == "per_head" else _packed_kernel

    B = lm_states.shape[0]
    out4 = 4 * out_pad
    lm = lm_states.astype(wdt)
    act = action_states.astype(wdt)

    weight_bytes = sum(int(p.size) * p.dtype.itemsize for p in params)
    row_bytes = 2 * D * lm.dtype.itemsize + out4 * 4
    if mode == "per_head":
        flops_per_row = 2 * (D * 4 * D + D * 2 * D + 4 * D * D + 4 * D * out_pad)
    else:
        flops_per_row = 2 * (2 * D * 4 * D + (4 * D) ** 2 + 4 * D * out4)

    def cost(rows):
        return pl.CostEstimate(flops=int(flops_per_row) * int(rows),
                               transcendentals=0,
                               bytes_accessed=int(weight_bytes + rows * row_bytes))

    fast_path = (B <= batch_tile and
                 weight_bytes + B * row_bytes <= vmem_budget_bytes)

    if fast_path:
        # Single block, no grid, one launch; everything VMEM-resident.
        need = weight_bytes + B * row_bytes
        vmem_limit = int(min(64 << 20, max(2 * need + (4 << 20), 16 << 20)))
        vspec = pl.BlockSpec(memory_space=pltpu.MemorySpace.VMEM)
        slab = pl.pallas_call(
            kernel,
            out_shape=jax.ShapeDtypeStruct((B, out4), jnp.float32),
            in_specs=[vspec] * 9,
            out_specs=vspec,
            compiler_params=pltpu.CompilerParams(vmem_limit_bytes=vmem_limit),
            cost_estimate=cost(B),
        )(lm, act, *params)
    else:
        # Gridded path: >=2 batch tiles ("parallel" so v7x's 2nd TC gets work);
        # weights stay VMEM-resident and single-buffered (index never moves).
        tb = min(batch_tile, _round_up(-(-B // 2), 8))
        Bp = _round_up(B, tb)
        if Bp != B:
            pad = ((0, Bp - B), (0, 0))
            lm, act = jnp.pad(lm, pad), jnp.pad(act, pad)
        x_spec = pl.BlockSpec((tb, D), lambda i: (i, 0))

        def wspec(a):
            return pl.BlockSpec(a.shape, lambda i: (0,) * a.ndim,
                                pipeline_mode=pl.Buffered(1))

        need = weight_bytes + 2 * tb * row_bytes
        vmem_limit = int(min(64 << 20, max(need + (8 << 20), 32 << 20)))
        slab = pl.pallas_call(
            kernel,
            out_shape=jax.ShapeDtypeStruct((Bp, out4), jnp.float32),
            grid=(Bp // tb,),
            in_specs=[x_spec, x_spec] + [wspec(p) for p in params],
            out_specs=pl.BlockSpec((tb, out4), lambda i: (i, 0)),
            compiler_params=pltpu.CompilerParams(
                dimension_semantics=("parallel",),
                vmem_limit_bytes=vmem_limit),
            cost_estimate=cost(Bp),
        )(lm, act, *params)
        slab = slab[:B]

    q1 = slab[:, 0 * out_pad:0 * out_pad + out_dim]
    q2 = slab[:, 1 * out_pad:1 * out_pad + out_dim]
    v1 = slab[:, 2 * out_pad:2 * out_pad + out_dim]
    v2 = slab[:, 3 * out_pad:3 * out_pad + out_dim]
    return q1, q2, v1, v2


# ---------------------------------------------------------------------------
# References and test harness
# ---------------------------------------------------------------------------
def _mlp3_ref_f32(x, w1, b1, w2, b2, w3, b3):
    h1 = jnp.maximum(x @ w1 + b1, 0.0)
    h2 = jnp.maximum(h1 @ w2 + b2, 0.0)
    return h2 @ w3 + b3


def _mlp3_ref_quant(x, w1, b1, w2, b2, w3, b3, dtype=jnp.bfloat16):
    """Original math with the same bf16-weight / f32-accumulate quantization."""
    def lin(h, w, b):
        return jnp.dot(h.astype(dtype), w.astype(dtype),
                       preferred_element_type=jnp.float32) + b
    h1 = jnp.maximum(lin(x, w1, b1), 0.0)
    h2 = jnp.maximum(lin(h1, w2, b2), 0.0)
    return lin(h2, w3, b3)


def _run_case(key, B, in_dim, out_dim):
    k_lm, k_act, k_c1, k_c2, k_v1, k_v2 = jax.random.split(key, 6)
    lm_states = jax.random.normal(k_lm, (B, in_dim), jnp.float32)
    action_states = jax.random.normal(k_act, (B, in_dim), jnp.float32)

    critic1_p = init_mlp(k_c1, in_dim * 2, in_dim, out_dim)
    critic2_p = init_mlp(k_c2, in_dim * 2, in_dim, out_dim)
    v_critic1_p = init_mlp(k_v1, in_dim, in_dim, out_dim)
    v_critic2_p = init_mlp(k_v2, in_dim, in_dim, out_dim)

    packed = pack_double_critic_params(critic1_p, critic2_p,
                                       v_critic1_p, v_critic2_p)
    outs = jax.block_until_ready(
        double_critic_forward(lm_states, action_states, packed))

    q_states = jnp.concatenate([lm_states, action_states], axis=1)
    head_inputs = (q_states, q_states, lm_states, lm_states)
    head_params = (critic1_p, critic2_p, v_critic1_p, v_critic2_p)
    for o, x, p in zip(outs, head_inputs, head_params):
        assert o.shape == (B, out_dim)
        # Strict check vs. the original math under the same bf16 quantization.
        r_q = _mlp3_ref_quant(x, *p)
        assert jnp.allclose(o, r_q, atol=1e-2, rtol=1e-2), \
            float(jnp.max(jnp.abs(o - r_q)))
        # Sanity check vs. the full-f32 reference (loose: bf16 weights).
        r_f = _mlp3_ref_f32(x, *p)
        scale = float(jnp.max(jnp.abs(r_f))) + 1.0
        assert float(jnp.max(jnp.abs(o - r_f))) < 0.05 * scale
    return packed["mode"]


if __name__ == "__main__":
    key = jax.random.PRNGKey(0)
    k1, k2 = jax.random.split(key)
    # Small pooled-embedding width: fused block-diagonal ("packed") kernel.
    m1 = _run_case(k1, B=2, in_dim=32, out_dim=4)
    assert m1 == "packed"
    # Larger width: per-head kernel (no block-diag zeros, trimmed W1_act).
    m2 = _run_case(k2, B=4, in_dim=256, out_dim=4)
    assert m2 == "per_head"
    print("KERNEL_OK")
</pallas_src>

<mosaic_0001>
module attributes {stable_mosaic.version = 11 : i64} {
  func.func @_packed_kernel(%arg0: memref<2x32xbf16, #tpu.memory_space<vmem>>, %arg1: memref<2x32xbf16, #tpu.memory_space<vmem>>, %arg2: memref<32x128xbf16, #tpu.memory_space<vmem>>, %arg3: memref<32x128xbf16, #tpu.memory_space<vmem>>, %arg4: memref<1x128xf32, #tpu.memory_space<vmem>>, %arg5: memref<128x128xbf16, #tpu.memory_space<vmem>>, %arg6: memref<1x128xf32, #tpu.memory_space<vmem>>, %arg7: memref<128x128xbf16, #tpu.memory_space<vmem>>, %arg8: memref<1x128xf32, #tpu.memory_space<vmem>>, %arg9: memref<2x128xf32, #tpu.memory_space<vmem>>) attributes {dimension_semantics = [], scalar_prefetch = 0 : i64, scratch_operands = 0 : i64, tpu.core_type = #tpu.core_type<tc>} {
    %c0 = arith.constant 0 : index
    %c0_0 = arith.constant 0 : index
    %0 = vector.load %arg0[%c0, %c0_0] : memref<2x32xbf16, #tpu.memory_space<vmem>>, vector<2x32xbf16>
    %c0_1 = arith.constant 0 : index
    %c0_2 = arith.constant 0 : index
    %1 = vector.load %arg2[%c0_1, %c0_2] : memref<32x128xbf16, #tpu.memory_space<vmem>>, vector<32x128xbf16>
    %cst = arith.constant dense<0.000000e+00> : vector<2x128xf32>
    %2 = tpu.matmul %0, %1, %cst {dimension_numbers = #tpu.dot_dimension_numbers<[1], [0], [0], [1], [0, 0, 1, 1], [], []>} : vector<2x32xbf16>, vector<32x128xbf16>, vector<2x128xf32> -> vector<2x128xf32>
    %c0_3 = arith.constant 0 : index
    %c0_4 = arith.constant 0 : index
    %3 = vector.load %arg1[%c0_3, %c0_4] : memref<2x32xbf16, #tpu.memory_space<vmem>>, vector<2x32xbf16>
    %c0_5 = arith.constant 0 : index
    %c0_6 = arith.constant 0 : index
    %4 = vector.load %arg3[%c0_5, %c0_6] : memref<32x128xbf16, #tpu.memory_space<vmem>>, vector<32x128xbf16>
    %cst_7 = arith.constant dense<0.000000e+00> : vector<2x128xf32>
    %5 = tpu.matmul %3, %4, %cst_7 {dimension_numbers = #tpu.dot_dimension_numbers<[1], [0], [0], [1], [0, 0, 1, 1], [], []>} : vector<2x32xbf16>, vector<32x128xbf16>, vector<2x128xf32> -> vector<2x128xf32>
    %6 = arith.addf %2, %5 : vector<2x128xf32>
    %c0_8 = arith.constant 0 : index
    %c0_9 = arith.constant 0 : index
    %7 = vector.load %arg4[%c0_8, %c0_9] : memref<1x128xf32, #tpu.memory_space<vmem>>, vector<1x128xf32>
    %8 = vector.broadcast %7 : vector<1x128xf32> to vector<2x128xf32>
    %9 = arith.addf %6, %8 : vector<2x128xf32>
    %cst_10 = arith.constant 0.000000e+00 : f32
    %10 = vector.broadcast %cst_10 : f32 to vector<2x128xf32>
    %11 = arith.maximumf %9, %10 : vector<2x128xf32>
    %12 = arith.truncf %11 : vector<2x128xf32> to vector<2x128xbf16>
    %c0_11 = arith.constant 0 : index
    %c0_12 = arith.constant 0 : index
    %13 = vector.load %arg5[%c0_11, %c0_12] : memref<128x128xbf16, #tpu.memory_space<vmem>>, vector<128x128xbf16>
    %cst_13 = arith.constant dense<0.000000e+00> : vector<2x128xf32>
    %14 = tpu.matmul %12, %13, %cst_13 {dimension_numbers = #tpu.dot_dimension_numbers<[1], [0], [0], [1], [0, 0, 1, 1], [], []>} : vector<2x128xbf16>, vector<128x128xbf16>, vector<2x128xf32> -> vector<2x128xf32>
    %c0_14 = arith.constant 0 : index
    %c0_15 = arith.constant 0 : index
    %15 = vector.load %arg6[%c0_14, %c0_15] : memref<1x128xf32, #tpu.memory_space<vmem>>, vector<1x128xf32>
    %16 = vector.broadcast %15 : vector<1x128xf32> to vector<2x128xf32>
    %17 = arith.addf %14, %16 : vector<2x128xf32>
    %cst_16 = arith.constant 0.000000e+00 : f32
    %18 = vector.broadcast %cst_16 : f32 to vector<2x128xf32>
    %19 = arith.maximumf %17, %18 : vector<2x128xf32>
    %20 = arith.truncf %19 : vector<2x128xf32> to vector<2x128xbf16>
    %c0_17 = arith.constant 0 : index
    %c0_18 = arith.constant 0 : index
    %21 = vector.load %arg7[%c0_17, %c0_18] : memref<128x128xbf16, #tpu.memory_space<vmem>>, vector<128x128xbf16>
    %cst_19 = arith.constant dense<0.000000e+00> : vector<2x128xf32>
    %22 = tpu.matmul %20, %21, %cst_19 {dimension_numbers = #tpu.dot_dimension_numbers<[1], [0], [0], [1], [0, 0, 1, 1], [], []>} : vector<2x128xbf16>, vector<128x128xbf16>, vector<2x128xf32> -> vector<2x128xf32>
    %c0_20 = arith.constant 0 : index
    %c0_21 = arith.constant 0 : index
    %23 = vector.load %arg8[%c0_20, %c0_21] : memref<1x128xf32, #tpu.memory_space<vmem>>, vector<1x128xf32>
    %24 = vector.broadcast %23 : vector<1x128xf32> to vector<2x128xf32>
    %25 = arith.addf %22, %24 : vector<2x128xf32>
    %c0_22 = arith.constant 0 : index
    %c0_23 = arith.constant 0 : index
    %26 = vector.load %arg9[%c0_22, %c0_23] : memref<2x128xf32, #tpu.memory_space<vmem>>, vector<2x128xf32>
    tpu.vector_store %arg9[%c0_22, %c0_23], %25 {strides = array<i32>} : memref<2x128xf32, #tpu.memory_space<vmem>>, vector<2x128xf32>,
    return
  }
}

</mosaic_0001>

<llo_original>
// kernel: tpu_custom_call.1
$region0: #{tpu_custom_call.1}
  #allocation0 [shape = 'u32[]', space=smem, size = 0x4, offset = 0x4, fixed_abs, tag = 'smem constant byte address 0x4 - core index']
  #allocation1 [shape = 'u32[144,128]{1,0:T(1,128)}', space=vmem, size = 0x12000, scoped, tag = 'internal scratch']
  %s0 = inlined_call_operand.hbm [shape: bf16[2,32], index: 0, kind: input, shape index: {}]
  %s1 = inlined_call_operand.vmem [shape: bf16[2,32], index: 1, kind: input, shape index: {}]
  %s2 = inlined_call_operand.hbm [shape: bf16[32,128], index: 2, kind: input, shape index: {}]
  %s3 = inlined_call_operand.hbm [shape: bf16[32,128], index: 3, kind: input, shape index: {}]
  %s4 = inlined_call_operand.vmem [shape: f32[1,128], index: 4, kind: input, shape index: {}]
  %s5 = inlined_call_operand.hbm [shape: bf16[128,128], index: 5, kind: input, shape index: {}]
  %s6 = inlined_call_operand.vmem [shape: f32[1,128], index: 6, kind: input, shape index: {}]
  %s7 = inlined_call_operand.hbm [shape: bf16[128,128], index: 7, kind: input, shape index: {}]
  %s8 = inlined_call_operand.vmem [shape: f32[1,128], index: 8, kind: input, shape index: {}]
  %s9 = inlined_call_operand.hbm [shape: f32[2,128], index: 9, kind: output, shape index: {}]
  %s10 = sld [smem:[#allocation0]]
  $region66: #{tpu_custom_call.1} parent=0
    _
  %s12 = ssub.s32 1, %s10
  %s13 = scalar_select 0, %s12, %s10
  $region1: #{tpu_custom_call.1} parent=0
    #allocation2 [shape = 'u8[512]{0}', space=vmem, size = 0x400, scoped, tag = 'input window, operand 0, single buffered']
    #allocation3 [shape = 's32[1]{0}', space=sflag, size = 0x4, scoped, tag = 'scoped memory for tpu_custom_call.1']
    #allocation4 [shape = 's32[1]{0}', space=sflag, size = 0x4, scoped, tag = 'scoped memory for tpu_custom_call.1']
    #allocation5 [shape = 'u8[8192]{0}', space=vmem, size = 0x2000, scoped, tag = 'input window, operand 2, single buffered']
    #allocation6 [shape = 's32[1]{0}', space=sflag, size = 0x4, scoped, tag = 'scoped memory for tpu_custom_call.1']
    #allocation7 [shape = 'u8[8192]{0}', space=vmem, size = 0x2000, scoped, tag = 'input window, operand 3, single buffered']
    #allocation8 [shape = 'u8[32768]{0}', space=vmem, size = 0x8000, scoped, tag = 'input window, operand 5, single buffered']
    #allocation9 [shape = 's32[1]{0}', space=sflag, size = 0x4, scoped, tag = 'scoped memory for tpu_custom_call.1']
    #allocation10 [shape = 'u8[32768]{0}', space=vmem, size = 0x8000, scoped, tag = 'input window, operand 7, single buffered']
    #allocation11 [shape = 'u8[1024]{0}', space=vmem, size = 0x400, scoped, tag = 'output window, operand 0, single buffered']
    %14 = vsyncpa [#allocation3], 0
    %15 = vsyncpa [#allocation6], 0
    %16 = vsyncpa [#allocation9], 0
    %17 = vsyncpa [#allocation4], 0
    // Predicated region
    $region2: #{tpu_custom_call.1} parent=1 // pred_check
      _
    $region3: #{tpu_custom_call.1} parent=1 // pred_check_branch
      %19 = sbr.rel (0) target = $region5
    $region4: #{tpu_custom_call.1} parent=1 // pred_region
      %s21 = ssub.s32 16, 16
      %22 = vsyncadd [#allocation3], %s21
      %s24 = sshll.u32 [#allocation2], 4
      %s25 = int_to_ptr.vmem [resolvable:$true] %s24
      %27 = dma.hbm_to_vmem [thread:$0]  %s0, 16, %s25, [#allocation3]
    $region5: #{tpu_custom_call.1} parent=1 // pred_fallthru
      _
    // Predicated region
    $region6: #{tpu_custom_call.1} parent=1 // pred_check
      _
    $region7: #{tpu_custom_call.1} parent=1 // pred_check_branch
      %29 = sbr.rel (0) target = $region9
    $region8: #{tpu_custom_call.1} parent=1 // pred_region
      _
    $region9: #{tpu_custom_call.1} parent=1 // pred_fallthru
      _
    // Predicated region
    $region10: #{tpu_custom_call.1} parent=1 // pred_check
      _
    $region11: #{tpu_custom_call.1} parent=1 // pred_check_branch
      %31 = sbr.rel (0) target = $region13
    $region12: #{tpu_custom_call.1} parent=1 // pred_region
      %s33 = ssub.s32 256, 256
      %34 = vsyncadd [#allocation6], %s33
      %s35 = sshll.u32 [#allocation5], 4
      %s36 = int_to_ptr.vmem [resolvable:$true] %s35
      %41 = dma.hbm_to_vmem [thread:$0]  %s2, 256, %s36, [#allocation6], 64, 64, 4
    $region13: #{tpu_custom_call.1} parent=1 // pred_fallthru
      _
    // Predicated region
    $region14: #{tpu_custom_call.1} parent=1 // pred_check
      _
    $region15: #{tpu_custom_call.1} parent=1 // pred_check_branch
      %43 = sbr.rel (0) target = $region17
    $region16: #{tpu_custom_call.1} parent=1 // pred_region
      %s45 = ssub.s32 256, 256
      %46 = vsyncadd [#allocation6], %s45
      %s47 = sshll.u32 [#allocation7], 4
      %s48 = int_to_ptr.vmem [resolvable:$true] %s47
      %53 = dma.hbm_to_vmem [thread:$0]  %s3, 256, %s48, [#allocation6], 64, 64, 4
    $region17: #{tpu_custom_call.1} parent=1 // pred_fallthru
      _
    // Predicated region
    $region18: #{tpu_custom_call.1} parent=1 // pred_check
      _
    $region19: #{tpu_custom_call.1} parent=1 // pred_check_branch
      %55 = sbr.rel (0) target = $region21
    $region20: #{tpu_custom_call.1} parent=1 // pred_region
      _
    $region21: #{tpu_custom_call.1} parent=1 // pred_fallthru
      _
    // Predicated region
    $region22: #{tpu_custom_call.1} parent=1 // pred_check
      _
    $region23: #{tpu_custom_call.1} parent=1 // pred_check_branch
      %57 = sbr.rel (0) target = $region25
    $region24: #{tpu_custom_call.1} parent=1 // pred_region
      %s59 = ssub.s32 1024, 1024
      %60 = vsyncadd [#allocation9], %s59
      %s61 = sshll.u32 [#allocation8], 4
      %s62 = int_to_ptr.vmem [resolvable:$true] %s61
      %67 = dma.hbm_to_vmem [thread:$0]  %s5, 1024, %s62, [#allocation9], 64, 64, 4
    $region25: #{tpu_custom_call.1} parent=1 // pred_fallthru
      _
    // Predicated region
    $region26: #{tpu_custom_call.1} parent=1 // pred_check
      _
    $region27: #{tpu_custom_call.1} parent=1 // pred_check_branch
      %69 = sbr.rel (0) target = $region29
    $region28: #{tpu_custom_call.1} parent=1 // pred_region
      _
    $region29: #{tpu_custom_call.1} parent=1 // pred_fallthru
      _
    // Predicated region
    $region30: #{tpu_custom_call.1} parent=1 // pred_check
      _
    $region31: #{tpu_custom_call.1} parent=1 // pred_check_branch
      %71 = sbr.rel (0) target = $region33
    $region32: #{tpu_custom_call.1} parent=1 // pred_region
      %s73 = ssub.s32 1024, 1024
      %74 = vsyncadd [#allocation9], %s73
      %s75 = sshll.u32 [#allocation10], 4
      %s76 = int_to_ptr.vmem [resolvable:$true] %s75
      %81 = dma.hbm_to_vmem [thread:$0]  %s7, 1024, %s76, [#allocation9], 64, 64, 4
    $region33: #{tpu_custom_call.1} parent=1 // pred_fallthru
      _
    // Predicated region
    $region34: #{tpu_custom_call.1} parent=1 // pred_check
      _
    $region35: #{tpu_custom_call.1} parent=1 // pred_check_branch
      %83 = sbr.rel (0) target = $region37
    $region36: #{tpu_custom_call.1} parent=1 // pred_region
      _
    $region37: #{tpu_custom_call.1} parent=1 // pred_fallthru
      _
    // Predicated region
    $region38: #{tpu_custom_call.1} parent=1 // pred_check
      _
    $region39: #{tpu_custom_call.1} parent=1 // pred_check_branch
      %85 = sbr.rel (0) target = $region41
    $region40: #{tpu_custom_call.1} parent=1 // pred_region
      %86 = dma.done [#allocation3], 16
    $region41: #{tpu_custom_call.1} parent=1 // pred_fallthru
      _
    // Predicated region
    $region42: #{tpu_custom_call.1} parent=1 // pred_check
      _
    $region43: #{tpu_custom_call.1} parent=1 // pred_check_branch
      %88 = sbr.rel (0) target = $region45
    $region44: #{tpu_custom_call.1} parent=1 // pred_region
      %89 = dma.done [#allocation6], 256
    $region45: #{tpu_custom_call.1} parent=1 // pred_fallthru
      _
    // Predicated region
    $region46: #{tpu_custom_call.1} parent=1 // pred_check
      _
    $region47: #{tpu_custom_call.1} parent=1 // pred_check_branch
      %91 = sbr.rel (0) target = $region49
    $region48: #{tpu_custom_call.1} parent=1 // pred_region
      %92 = dma.done [#allocation6], 256
    $region49: #{tpu_custom_call.1} parent=1 // pred_fallthru
      _
    // Predicated region
    $region50: #{tpu_custom_call.1} parent=1 // pred_check
      _
    $region51: #{tpu_custom_call.1} parent=1 // pred_check_branch
      %94 = sbr.rel (0) target = $region53
    $region52: #{tpu_custom_call.1} parent=1 // pred_region
      %95 = dma.done [#allocation9], 1024
    $region53: #{tpu_custom_call.1} parent=1 // pred_fallthru
      _
    // Predicated region
    $region54: #{tpu_custom_call.1} parent=1 // pred_check
      _
    $region55: #{tpu_custom_call.1} parent=1 // pred_check_branch
      %97 = sbr.rel (0) target = $region57
    $region56: #{tpu_custom_call.1} parent=1 // pred_region
      %98 = dma.done [#allocation9], 1024
    $region57: #{tpu_custom_call.1} parent=1 // pred_fallthru
      _
    %v100 = vld [vmem:[#allocation2] sm:$0x1]
    %v101 = vld [vmem:[#allocation5] sm:$0xf]
    %v102 = vld [vmem:[#allocation5 + $0x4] sm:$0xf]
    %v103 = vld [vmem:[#allocation5 + $0x8] sm:$0xf]
    %v104 = vld [vmem:[#allocation5 + $0xc] sm:$0xf]
    %v105 = vld [vmem:[%s1] sm:$0x1]
    %v106 = vld [vmem:[#allocation7] sm:$0xf]
    %v107 = vld [vmem:[#allocation7 + $0x4] sm:$0xf]
    %v108 = vld [vmem:[#allocation7 + $0x8] sm:$0xf]
    %v109 = vld [vmem:[#allocation7 + $0xc] sm:$0xf]
    %v114 = vunpack.c.l.b16 %v106
    %v115 = vunpack.c.l.b16 %v107
    %v116 = vunpack.c.l.b16 %v108
    %v117 = vunpack.c.l.b16 %v109
    %v118 = vpack.c.b16 %v115, %v114
    %v119 = vpack.c.b16 %v117, %v116
    %vm122 = vcmask 261120
    %v124 = vsel %vm122, %v105, 0
    %126 = vmatprep.subr.bf16.mxu0 0
    %127 = vmatpush1.bf16.msra.mxu0 %v118
    %128 = vmatprep.subr.bf16.mxu0 0
    %129 = vmatpush1.bf16.msra.mxu0 %v119
    %130 = vmatprep.subr.bf16.mxu0 0
    %131 = vmatpush1.bf16.msra.mxu0 0
    %132 = vmatprep.subr.bf16.mxu0 0
    %133 = vmatpush1.bf16.msra.mxu0 0
    %134 = vmatprep.subr.bf16.mxu0 0
    %135 = vmatpush1.bf16.msra.mxu0 0
    %136 = vmatprep.subr.bf16.mxu0 0
    %137 = vmatpush1.bf16.msra.mxu0 0
    %138 = vmatprep.subr.bf16.mxu0 0
    %139 = vmatpush1.bf16.msra.mxu0 0
    %140 = vmatprep.subr.bf16.mxu0 0
    %141 = vmatpush1.bf16.msra.mxu0 0
    %142 = vmatprep.subr.bf16.mxu0 0
    %143 = vmatpush1.bf16.msra.mxu0 0
    %144 = vmatprep.subr.bf16.mxu0 0
    %145 = vmatpush1.bf16.msra.mxu0 0
    %146 = vmatprep.subr.bf16.mxu0 0
    %147 = vmatpush1.bf16.msra.mxu0 0
    %148 = vmatprep.subr.bf16.mxu0 0
    %149 = vmatpush1.bf16.msra.mxu0 0
    %150 = vmatprep.subr.bf16.mxu0 0
    %151 = vmatpush1.bf16.msra.mxu0 0
    %152 = vmatprep.subr.bf16.mxu0 0
    %153 = vmatpush1.bf16.msra.mxu0 0
    %154 = vmatprep.subr.bf16.mxu0 0
    %155 = vmatpush1.bf16.msra.mxu0 0
    %156 = vmatprep.subr.bf16.mxu0 0
    %157 = vmatpush1.bf16.msra.mxu0 0
    %158 = vmatprep.mubr.bf16.mxu0 0
    %159 = vmatmul.mubr.bf16.gmra.mrb[0].mxu0 %v124
    %v160 = vpop.f32.mrb[0].mxu0
    %v161 = vadd.f32 0.0, %v160
    %v162 = vpop.f32.mrb[0].mxu0
    %v163 = vpop.f32.mrb[0].mxu0
    %v164 = vpop.f32.mrb[0].mxu0
    %165 = vdwg.mxu0
    %v170 = vunpack.c.l.b16 %v101
    %v171 = vunpack.c.l.b16 %v102
    %v172 = vunpack.c.l.b16 %v103
    %v173 = vunpack.c.l.b16 %v104
    %v174 = vpack.c.b16 %v171, %v170
    %v175 = vpack.c.b16 %v173, %v172
    %v179 = vsel %vm122, %v100, 0
    %181 = vmatprep.subr.bf16.mxu0 0
    %182 = vmatpush1.bf16.msra.mxu0 %v174
    %183 = vmatprep.subr.bf16.mxu0 0
    %184 = vmatpush1.bf16.msra.mxu0 %v175
    %185 = vmatprep.subr.bf16.mxu0 0
    %186 = vmatpush1.bf16.msra.mxu0 0
    %187 = vmatprep.subr.bf16.mxu0 0
    %188 = vmatpush1.bf16.msra.mxu0 0
    %189 = vmatprep.subr.bf16.mxu0 0
    %190 = vmatpush1.bf16.msra.mxu0 0
    %191 = vmatprep.subr.bf16.mxu0 0
    %192 = vmatpush1.bf16.msra.mxu0 0
    %193 = vmatprep.subr.bf16.mxu0 0
    %194 = vmatpush1.bf16.msra.mxu0 0
    %195 = vmatprep.subr.bf16.mxu0 0
    %196 = vmatpush1.bf16.msra.mxu0 0
    %197 = vmatprep.subr.bf16.mxu0 0
    %198 = vmatpush1.bf16.msra.mxu0 0
    %199 = vmatprep.subr.bf16.mxu0 0
    %200 = vmatpush1.bf16.msra.mxu0 0
    %201 = vmatprep.subr.bf16.mxu0 0
    %202 = vmatpush1.bf16.msra.mxu0 0
    %203 = vmatprep.subr.bf16.mxu0 0
    %204 = vmatpush1.bf16.msra.mxu0 0
    %205 = vmatprep.subr.bf16.mxu0 0
    %206 = vmatpush1.bf16.msra.mxu0 0
    %207 = vmatprep.subr.bf16.mxu0 0
    %208 = vmatpush1.bf16.msra.mxu0 0
    %209 = vmatprep.subr.bf16.mxu0 0
    %210 = vmatpush1.bf16.msra.mxu0 0
    %211 = vmatprep.subr.bf16.mxu0 0
    %212 = vmatpush1.bf16.msra.mxu0 0
    %213 = vmatprep.mubr.bf16.mxu0 0
    %214 = vmatmul.mubr.bf16.gmra.mrb[0].mxu0 %v179
    %v215 = vpop.f32.mrb[0].mxu0
    %v216 = vadd.f32 %v161, %v215
    %v217 = vpop.f32.mrb[0].mxu0
    %v218 = vpop.f32.mrb[0].mxu0
    %v219 = vpop.f32.mrb[0].mxu0
    %220 = vdwg.mxu0
    %v221 = vld [vmem:[%s4] sm:$0x1]
    %v223 = vlaneseq
    %v224 = vshrl.u32 %v223, 7
    %v225 = vsub.s32 0, %v224
    %v226 = vrot.slane %v221, %v225
    %v228 = vadd.f32 %v216, %v226
    %v229 = vmax.f32 %v228, 0.0
    %v230 = vpack.c.bf16 %v229, %v229
    %v231 = vld [vmem:[#allocation8] sm:$0xf]
    %v232 = vld [vmem:[#allocation8 + $0x4] sm:$0xf]
    %v233 = vld [vmem:[#allocation8 + $0x8] sm:$0xf]
    %v234 = vld [vmem:[#allocation8 + $0xc] sm:$0xf]
    %v235 = vld [vmem:[#allocation8 + $0x10] sm:$0xf]
    %v236 = vld [vmem:[#allocation8 + $0x14] sm:$0xf]
    %v237 = vld [vmem:[#allocation8 + $0x18] sm:$0xf]
    %v238 = vld [vmem:[#allocation8 + $0x1c] sm:$0xf]
    %v239 = vld [vmem:[#allocation8 + $0x20] sm:$0xf]
    %v240 = vld [vmem:[#allocation8 + $0x24] sm:$0xf]
    %v241 = vld [vmem:[#allocation8 + $0x28] sm:$0xf]
    %v242 = vld [vmem:[#allocation8 + $0x2c] sm:$0xf]
    %v243 = vld [vmem:[#allocation8 + $0x30] sm:$0xf]
    %v244 = vld [vmem:[#allocation8 + $0x34] sm:$0xf]
    %v245 = vld [vmem:[#allocation8 + $0x38] sm:$0xf]
    %v246 = vld [vmem:[#allocation8 + $0x3c] sm:$0xf]
    %v247 = vld [vmem:[%s6] sm:$0x1]
    %v249 = vlaneseq
    %v250 = vshrl.u32 %v249, 7
    %v251 = vsub.s32 0, %v250
    %v252 = vrot.slane %v247, %v251
    %v270 = vunpack.c.l.b16 %v231
    %v271 = vunpack.c.l.b16 %v232
    %v272 = vunpack.c.l.b16 %v233
    %v273 = vunpack.c.l.b16 %v234
    %v274 = vunpack.c.l.b16 %v235
    %v275 = vunpack.c.l.b16 %v236
    %v276 = vunpack.c.l.b16 %v237
    %v277 = vunpack.c.l.b16 %v238
    %v278 = vunpack.c.l.b16 %v239
    %v279 = vunpack.c.l.b16 %v240
    %v280 = vunpack.c.l.b16 %v241
    %v281 = vunpack.c.l.b16 %v242
    %v282 = vunpack.c.l.b16 %v243
    %v283 = vunpack.c.l.b16 %v244
    %v284 = vunpack.c.l.b16 %v245
    %v285 = vunpack.c.l.b16 %v246
    %v286 = vpack.c.b16 %v271, %v270
    %v287 = vpack.c.b16 %v273, %v272
    %v288 = vpack.c.b16 %v275, %v274
    %v289 = vpack.c.b16 %v277, %v276
    %v290 = vpack.c.b16 %v279, %v278
    %v291 = vpack.c.b16 %v281, %v280
    %v292 = vpack.c.b16 %v283, %v282
    %v293 = vpack.c.b16 %v285, %v284
    %302 = vmatprep.subr.bf16.mxu0 0
    %303 = vmatpush1.bf16.msra.mxu0 %v286
    %304 = vmatprep.subr.bf16.mxu0 0
    %305 = vmatpush1.bf16.msra.mxu0 %v287
    %306 = vmatprep.subr.bf16.mxu0 0
    %307 = vmatpush1.bf16.msra.mxu0 %v288
    %308 = vmatprep.subr.bf16.mxu0 0
    %309 = vmatpush1.bf16.msra.mxu0 %v289
    %310 = vmatprep.subr.bf16.mxu0 0
    %311 = vmatpush1.bf16.msra.mxu0 %v290
    %312 = vmatprep.subr.bf16.mxu0 0
    %313 = vmatpush1.bf16.msra.mxu0 %v291
    %314 = vmatprep.subr.bf16.mxu0 0
    %315 = vmatpush1.bf16.msra.mxu0 %v292
    %316 = vmatprep.subr.bf16.mxu0 0
    %317 = vmatpush1.bf16.msra.mxu0 %v293
    %318 = vmatprep.subr.bf16.mxu0 0
    %319 = vmatpush1.bf16.msra.mxu0 0
    %320 = vmatprep.subr.bf16.mxu0 0
    %321 = vmatpush1.bf16.msra.mxu0 0
    %322 = vmatprep.subr.bf16.mxu0 0
    %323 = vmatpush1.bf16.msra.mxu0 0
    %324 = vmatprep.subr.bf16.mxu0 0
    %325 = vmatpush1.bf16.msra.mxu0 0
    %326 = vmatprep.subr.bf16.mxu0 0
    %327 = vmatpush1.bf16.msra.mxu0 0
    %328 = vmatprep.subr.bf16.mxu0 0
    %329 = vmatpush1.bf16.msra.mxu0 0
    %330 = vmatprep.subr.bf16.mxu0 0
    %331 = vmatpush1.bf16.msra.mxu0 0
    %332 = vmatprep.subr.bf16.mxu0 0
    %333 = vmatpush1.bf16.msra.mxu0 0
    %334 = vmatprep.mubr.bf16.mxu0 0
    %335 = vmatmul.mubr.bf16.gmra.mrb[0].mxu0 %v230
    %v336 = vpop.f32.mrb[0].mxu0
    %v337 = vadd.f32 %v252, %v336
    %v338 = vpop.f32.mrb[0].mxu0
    %v339 = vpop.f32.mrb[0].mxu0
    %v340 = vpop.f32.mrb[0].mxu0
    %341 = vdwg.mxu0
    %v342 = vmax.f32 %v337, 0.0
    %v343 = vpack.c.bf16 %v342, %v342
    %v344 = vld [vmem:[#allocation10] sm:$0xf]
    %v345 = vld [vmem:[#allocation10 + $0x4] sm:$0xf]
    %v346 = vld [vmem:[#allocation10 + $0x8] sm:$0xf]
    %v347 = vld [vmem:[#allocation10 + $0xc] sm:$0xf]
    %v348 = vld [vmem:[#allocation10 + $0x10] sm:$0xf]
    %v349 = vld [vmem:[#allocation10 + $0x14] sm:$0xf]
    %v350 = vld [vmem:[#allocation10 + $0x18] sm:$0xf]
    %v351 = vld [vmem:[#allocation10 + $0x1c] sm:$0xf]
    %v352 = vld [vmem:[#allocation10 + $0x20] sm:$0xf]
    %v353 = vld [vmem:[#allocation10 + $0x24] sm:$0xf]
    %v354 = vld [vmem:[#allocation10 + $0x28] sm:$0xf]
    %v355 = vld [vmem:[#allocation10 + $0x2c] sm:$0xf]
    %v356 = vld [vmem:[#allocation10 + $0x30] sm:$0xf]
    %v357 = vld [vmem:[#allocation10 + $0x34] sm:$0xf]
    %v358 = vld [vmem:[#allocation10 + $0x38] sm:$0xf]
    %v359 = vld [vmem:[#allocation10 + $0x3c] sm:$0xf]
    %v360 = vld [vmem:[%s8] sm:$0x1]
    %v362 = vlaneseq
    %v363 = vshrl.u32 %v362, 7
    %v364 = vsub.s32 0, %v363
    %v365 = vrot.slane %v360, %v364
    %v383 = vunpack.c.l.b16 %v344
    %v384 = vunpack.c.l.b16 %v345
    %v385 = vunpack.c.l.b16 %v346
    %v386 = vunpack.c.l.b16 %v347
    %v387 = vunpack.c.l.b16 %v348
    %v388 = vunpack.c.l.b16 %v349
    %v389 = vunpack.c.l.b16 %v350
    %v390 = vunpack.c.l.b16 %v351
    %v391 = vunpack.c.l.b16 %v352
    %v392 = vunpack.c.l.b16 %v353
    %v393 = vunpack.c.l.b16 %v354
    %v394 = vunpack.c.l.b16 %v355
    %v395 = vunpack.c.l.b16 %v356
    %v396 = vunpack.c.l.b16 %v357
    %v397 = vunpack.c.l.b16 %v358
    %v398 = vunpack.c.l.b16 %v359
    %v399 = vpack.c.b16 %v384, %v383
    %v400 = vpack.c.b16 %v386, %v385
    %v401 = vpack.c.b16 %v388, %v387
    %v402 = vpack.c.b16 %v390, %v389
    %v403 = vpack.c.b16 %v392, %v391
    %v404 = vpack.c.b16 %v394, %v393
    %v405 = vpack.c.b16 %v396, %v395
    %v406 = vpack.c.b16 %v398, %v397
    %415 = vmatprep.subr.bf16.mxu0 0
    %416 = vmatpush1.bf16.msra.mxu0 %v399
    %417 = vmatprep.subr.bf16.mxu0 0
    %418 = vmatpush1.bf16.msra.mxu0 %v400
    %419 = vmatprep.subr.bf16.mxu0 0
    %420 = vmatpush1.bf16.msra.mxu0 %v401
    %421 = vmatprep.subr.bf16.mxu0 0
    %422 = vmatpush1.bf16.msra.mxu0 %v402
    %423 = vmatprep.subr.bf16.mxu0 0
    %424 = vmatpush1.bf16.msra.mxu0 %v403
    %425 = vmatprep.subr.bf16.mxu0 0
    %426 = vmatpush1.bf16.msra.mxu0 %v404
    %427 = vmatprep.subr.bf16.mxu0 0
    %428 = vmatpush1.bf16.msra.mxu0 %v405
    %429 = vmatprep.subr.bf16.mxu0 0
    %430 = vmatpush1.bf16.msra.mxu0 %v406
    %431 = vmatprep.subr.bf16.mxu0 0
    %432 = vmatpush1.bf16.msra.mxu0 0
    %433 = vmatprep.subr.bf16.mxu0 0
    %434 = vmatpush1.bf16.msra.mxu0 0
    %435 = vmatprep.subr.bf16.mxu0 0
    %436 = vmatpush1.bf16.msra.mxu0 0
    %437 = vmatprep.subr.bf16.mxu0 0
    %438 = vmatpush1.bf16.msra.mxu0 0
    %439 = vmatprep.subr.bf16.mxu0 0
    %440 = vmatpush1.bf16.msra.mxu0 0
    %441 = vmatprep.subr.bf16.mxu0 0
    %442 = vmatpush1.bf16.msra.mxu0 0
    %443 = vmatprep.subr.bf16.mxu0 0
    %444 = vmatpush1.bf16.msra.mxu0 0
    %445 = vmatprep.subr.bf16.mxu0 0
    %446 = vmatpush1.bf16.msra.mxu0 0
    %447 = vmatprep.mubr.bf16.mxu0 0
    %448 = vmatmul.mubr.bf16.gmra.mrb[0].mxu0 %v343
    %v449 = vpop.f32.mrb[0].mxu0
    %v450 = vadd.f32 %v365, %v449
    %v451 = vpop.f32.mrb[0].mxu0
    %v452 = vpop.f32.mrb[0].mxu0
    %v453 = vpop.f32.mrb[0].mxu0
    %454 = vdwg.mxu0
    %455 = vst [vmem:[#allocation11] sm:$0x3] %v450
    // Predicated region
    $region58: #{tpu_custom_call.1} parent=1 // pred_check
      _
    $region59: #{tpu_custom_call.1} parent=1 // pred_check_branch
      %457 = sbr.rel (0) target = $region61
    $region60: #{tpu_custom_call.1} parent=1 // pred_region
      %s459 = ssub.s32 32, 32
      %460 = vsyncadd [#allocation4], %s459
      %s462 = sshll.u32 [#allocation11], 4
      %s463 = int_to_ptr.vmem [resolvable:$true] %s462
      %465 = dma.vmem_to_hbm [thread:$0]  %s463, 32, %s9, [#allocation4]
    $region61: #{tpu_custom_call.1} parent=1 // pred_fallthru
      _
    // Predicated region
    $region62: #{tpu_custom_call.1} parent=1 // pred_check
      _
    $region63: #{tpu_custom_call.1} parent=1 // pred_check_branch
      %467 = sbr.rel (0) target = $region65
    $region64: #{tpu_custom_call.1} parent=1 // pred_region
      %468 = dma.done [#allocation4], 32
    $region65: #{tpu_custom_call.1} parent=1 // pred_fallthru
      _
    %469 = vsyncpa [#allocation3], 1
    %470 = vsyncpa [#allocation6], 1
    %471 = vsyncpa [#allocation9], 1
    %472 = vsyncpa [#allocation4], 1

</llo_original>
